<compile_context>
chip_gen: v6e
topology: v6e:2x2x1
jax: 0.10.0
libtpu: 0.0.40
codegen_flags: <defaults>
</compile_context>

<pallas_src>
import jax
import jax.numpy as jnp
from jax import lax
from jax.experimental import pallas as pl
from jax.experimental.pallas import tpu as pltpu

EPS = 0.001          # matches `eps` in the PyTorch module
_PAD_NEG = -1e9      # masked-logit value: sigmoid->0, stable BCE term->0
_LANES = 128


def _round_up(v, m):
    return (v + m - 1) // m * m


def _chip_tuning():
    """Returns (per-input block byte budget, use_approx_reciprocal)."""
    kind = ''
    try:
        kind = jax.devices()[0].device_kind.lower()
    except Exception:
        pass
    if 'v7' in kind or 'tpu7' in kind or '7x' in kind:
        return (6 << 20), True      # v7x: large steps amortize per-step overhead
    if 'v6' in kind:
        return (4 << 20), False     # v6e: HBM-bound, exact rcp is free
    if 'v5p' in kind or 'v4' in kind:
        return (2 << 20), False
    return (1 << 20), False         # v5e / unknown: stay inside 16 MiB scoped VMEM


def _make_kernel(sb, d_tile, kps, d_total, include_bce, include_dj, approx_rcp):
    n_chunks = d_tile // _LANES
    unroll = max(1, min(8, n_chunks))

    def kernel(x_ref, t_ref, o_ref, acc_ref):
        c = pl.program_id(0)
        k = pl.program_id(2)

        @pl.when(k == 0)
        def _init():
            acc_ref[...] = jnp.zeros_like(acc_ref)

        base_col = (c * kps + k) * d_tile
        lane = lax.broadcasted_iota(jnp.int32, (sb, _LANES), 1)

        def chunk(j, carry):
            bce_a, inter_a, p_a, t_a = carry
            off = pl.multiple_of(j * _LANES, _LANES)
            xv = x_ref[:, pl.ds(off, _LANES)].astype(jnp.float32)
            tv = t_ref[:, pl.ds(off, _LANES)].astype(jnp.float32)
            # Mask the ragged D tail / fully out-of-range split blocks.
            valid = lane < (d_total - base_col - off)
            xv = jnp.where(valid, xv, _PAD_NEG)
            tv = jnp.where(valid, tv, 0.0)
            e = jnp.exp(-jnp.abs(xv))                    # shared exp(-|x|)
            if include_dj:
                r = pl.reciprocal(1.0 + e, approx=approx_rcp)
                p = jnp.where(xv >= 0.0, r, e * r)       # overflow-free sigmoid
                inter_a = inter_a + p * tv
                p_a = p_a + p
                t_a = t_a + tv
            if include_bce:
                # stable BCEWithLogits term: max(x,0) - x*t + log(1 + exp(-|x|))
                bce_a = bce_a + (jnp.maximum(xv, 0.0) - xv * tv + jnp.log(1.0 + e))
            return bce_a, inter_a, p_a, t_a

        zero = jnp.zeros((sb, _LANES), jnp.float32)
        bce_s, inter_s, p_s, t_s = lax.fori_loop(
            0, n_chunks, chunk, (zero, zero, zero, zero), unroll=unroll)

        # Full-tile accumulator updates (one per active quantity).
        if include_bce:
            acc_ref[0] += bce_s
        if include_dj:
            acc_ref[1] += inter_s
            acc_ref[2] += p_s
            acc_ref[3] += t_s

        @pl.when(k == kps - 1)
        def _finalize():
            # In-kernel 128-lane reduction -> tiny (4, sb) per-sample sums.
            o_ref[0, 0] = jnp.sum(acc_ref[...], axis=-1)

    return kernel


def bce_dice_jaccard_loss(logits, target, weights, *, block_budget_bytes=None):
    """Forward of BCEDiceJaccardLoss (weight buffer = None, size_average=True).

    `weights` must be a static Python dict (e.g. {'bce': .5, 'jacc': .25, 'dice': .25}).
    """
    include_bce = bool(weights.get('bce', 0))
    include_dj = bool(weights.get('dice', 0)) or bool(weights.get('jacc', 0))
    n = logits.shape[0]
    d = 1
    for s in logits.shape[1:]:
        d *= s
    if not (include_bce or include_dj) or n == 0 or d == 0:
        return jnp.float32(0.0)

    x = logits.reshape(n, d)      # no-copy reshape of the contiguous NCHW input
    t = target.reshape(n, d)

    budget, approx_rcp = _chip_tuning()
    if block_budget_bytes is not None:
        budget = block_budget_bytes

    # ---- tiling (no padding anywhere) ------------------------------------
    sb = 8 if n >= 8 else n                      # satisfies the sublane rule
    nb = pl.cdiv(n, sb)
    itemsize = max(x.dtype.itemsize, t.dtype.itemsize, 1)
    d_lanes = _round_up(d, _LANES)
    cap = max(_LANES, (budget // (sb * itemsize)) // _LANES * _LANES)
    d_tile = min(d_lanes, cap)                   # multiple of 128
    kb = pl.cdiv(d, d_tile)                      # real D blocks
    c_split = 2 if kb >= 2 else 1                # use both TCs on v7x
    kps = pl.cdiv(kb, c_split)

    def in_map(c, i, k):
        # Clamp: an odd split's last (c, k) may fall past the real range; the
        # kernel masks its contribution to exactly zero anyway.
        return (i, jnp.minimum(c * kps + k, kb - 1))

    kernel = _make_kernel(sb, d_tile, kps, d, include_bce, include_dj, approx_rcp)

    bx = sb * d_tile * x.dtype.itemsize
    bt = sb * d_tile * t.dtype.itemsize
    vmem_limit = int(min(64 << 20, max(32 << 20, 2 * (bx + bt) + (8 << 20))))

    cost = pl.CostEstimate(
        flops=16 * n * d_lanes,
        transcendentals=3 * n * d_lanes,
        bytes_accessed=n * d * (x.dtype.itemsize + t.dtype.itemsize)
        + c_split * nb * 4 * sb * 4,
    )

    out = pl.pallas_call(
        kernel,
        out_shape=jax.ShapeDtypeStruct((c_split, nb, 4, sb), jnp.float32),
        grid_spec=pltpu.PrefetchScalarGridSpec(
            num_scalar_prefetch=0,
            grid=(c_split, nb, kps),
            in_specs=[
                pl.BlockSpec((sb, d_tile), in_map),
                pl.BlockSpec((sb, d_tile), in_map),
            ],
            out_specs=pl.BlockSpec((1, 1, 4, sb), lambda c, i, k: (c, i, 0, 0)),
            scratch_shapes=[pltpu.VMEM((4, sb, _LANES), jnp.float32)],
        ),
        compiler_params=pltpu.CompilerParams(
            dimension_semantics=("parallel", "parallel", "arbitrary"),
            vmem_limit_bytes=vmem_limit),
        cost_estimate=cost,
    )(x, t)

    # Tiny finalize in plain JAX: combine c-split partials + scalar mixing.
    sums = jnp.moveaxis(out.sum(axis=0), 1, 2).reshape(nb * sb, 4)[:n]   # (n, 4)
    bce_s, inter, psum, tsum = sums[:, 0], sums[:, 1], sums[:, 2], sums[:, 3]

    loss = jnp.float32(0.0)
    if include_bce:
        bce = jnp.sum(bce_s) / jnp.float32(n * d)          # mean over all elements
        loss = loss + weights['bce'] * bce
    if weights.get('jacc', 0):
        jacc_scores = (inter + EPS) / (psum + tsum - inter + EPS)
        jacc = jnp.clip(jnp.sum(jacc_scores) / jnp.float32(n), 0.0, 1.0)
        loss = loss + weights['jacc'] * (1.0 - jacc)
    if weights.get('dice', 0):
        dice_scores = (2.0 * inter + EPS) / (psum + tsum + EPS)
        dice = jnp.clip(jnp.sum(dice_scores) / jnp.float32(n), 0.0, 1.0)
        loss = loss + weights['dice'] * (1.0 - dice)
    return loss


def _reference_loss(logits, target, weights):
    """Pure-JAX reference mirroring the PyTorch semantics."""
    n = logits.shape[0]
    x = logits.reshape(n, -1).astype(jnp.float32)
    t = target.reshape(n, -1).astype(jnp.float32)
    p = jax.nn.sigmoid(x)
    bce = jnp.mean(jnp.maximum(x, 0.0) - x * t + jnp.log1p(jnp.exp(-jnp.abs(x))))
    inter = jnp.sum(p * t, axis=1)
    dice = jnp.clip(jnp.mean((2.0 * inter + EPS) /
                             (jnp.sum(p, 1) + jnp.sum(t, 1) + EPS)), 0.0, 1.0)
    jacc = jnp.clip(jnp.mean((inter + EPS) /
                             (jnp.sum(p + t, 1) - inter + EPS)), 0.0, 1.0)
    loss = jnp.float32(0.0)
    if weights.get('bce', 0):
        loss = loss + weights['bce'] * bce
    if weights.get('jacc', 0):
        loss = loss + weights['jacc'] * (1.0 - jacc)
    if weights.get('dice', 0):
        loss = loss + weights['dice'] * (1.0 - dice)
    return loss


if __name__ == "__main__":
    loss_weights = {'bce': 0.5, 'jacc': 0.25, 'dice': 0.25}

    key = jax.random.PRNGKey(0)
    k1, k2, k3, k4 = jax.random.split(key, 4)

    # Primary check: NCHW batch=2, channels=4, spatial=16 (D = 1024).
    logits = jax.random.normal(k1, (2, 4, 16, 16), dtype=jnp.float32)
    target = jax.random.bernoulli(k2, 0.3, (2, 4, 16, 16)).astype(jnp.float32)
    out = jax.block_until_ready(bce_dice_jaccard_loss(logits, target, loss_weights))
    ref = jax.block_until_ready(_reference_loss(logits, target, loss_weights))
    assert jnp.allclose(out, ref, atol=2e-3, rtol=2e-3), (out, ref)

    # Ragged D (900 elements/sample, not a multiple of 128) exercises masking.
    lg2 = jax.random.normal(k3, (3, 3, 10, 10), dtype=jnp.float32)
    tg2 = jax.random.bernoulli(k4, 0.3, (3, 3, 10, 10)).astype(jnp.float32)
    out2 = jax.block_until_ready(bce_dice_jaccard_loss(lg2, tg2, loss_weights))
    ref2 = jax.block_until_ready(_reference_loss(lg2, tg2, loss_weights))
    assert jnp.allclose(out2, ref2, atol=2e-3, rtol=2e-3), (out2, ref2)

    # Tiny block budget forces multi-k + c-split + clamped-index path.
    out3 = jax.block_until_ready(
        bce_dice_jaccard_loss(logits, target, loss_weights, block_budget_bytes=3072))
    assert jnp.allclose(out3, ref, atol=2e-3, rtol=2e-3), (out3, ref)

    print("KERNEL_OK")
</pallas_src>

<mosaic_0001>
module attributes {stable_mosaic.version = 11 : i64} {
  func.func @kernel(%arg0: i32, %arg1: i32, %arg2: i32, %arg3: memref<2x1024xf32, #tpu.memory_space<vmem>>, %arg4: memref<2x1024xf32, #tpu.memory_space<vmem>>, %arg5: memref<1x1x4x2xf32, #tpu.memory_space<vmem>>, %arg6: memref<4x2x128xf32, #tpu.memory_space<vmem>>) attributes {dimension_semantics = [#tpu.dimension_semantics<parallel>, #tpu.dimension_semantics<parallel>, #tpu.dimension_semantics<arbitrary>], iteration_bounds = array<i64: 1, 1, 1>, scalar_prefetch = 0 : i64, scratch_operands = 1 : i64, tpu.core_type = #tpu.core_type<tc>, window_params = [{transform_indices = @transform_0, window_bounds = array<i64: 2, 1024>}, {transform_indices = @transform_1, window_bounds = array<i64: 2, 1024>}, {transform_indices = @transform_2, window_bounds = array<i64: 1, 1, 4, 2>}]} {
    %c0_i32 = arith.constant 0 : i32
    %0 = arith.cmpi eq, %arg2, %c0_i32 : i32
    %1 = arith.extui %0 : i1 to i32
    %c0_i32_0 = arith.constant 0 : i32
    %2 = arith.cmpi ne, %1, %c0_i32_0 : i32
    scf.if %2 {
      %cst_112 = arith.constant 0.000000e+00 : f32
      %339 = vector.broadcast %cst_112 : f32 to vector<4x2x128xf32>
      %c0_113 = arith.constant 0 : index
      %c0_114 = arith.constant 0 : index
      %c0_115 = arith.constant 0 : index
      %340 = vector.load %arg6[%c0_113, %c0_114, %c0_115] : memref<4x2x128xf32, #tpu.memory_space<vmem>>, vector<4x2x128xf32>
      tpu.vector_store %arg6[%c0_113, %c0_114, %c0_115], %339 {strides = array<i32>} : memref<4x2x128xf32, #tpu.memory_space<vmem>>, vector<4x2x128xf32>,
    } else {
    }
    %c1_i32 = arith.constant 1 : i32
    %3 = arith.muli %arg0, %c1_i32 : i32
    %4 = arith.addi %3, %arg2 : i32
    %c1024_i32 = arith.constant 1024 : i32
    %5 = arith.muli %4, %c1024_i32 : i32
    %6 = tpu.iota {dimensions = array<i32: 1>} : vector<2x128xi32>
    %cst = arith.constant 0.000000e+00 : f32
    %7 = vector.broadcast %cst : f32 to vector<2x128xf32>
    %c0_i32_1 = arith.constant 0 : i32
    %c128_i32 = arith.constant 128 : i32
    %8 = arith.muli %c0_i32_1, %c128_i32 : i32
    %9 = tpu.assume_multiple %8, 128 : i32
    %c0 = arith.constant 0 : index
    %10 = arith.index_cast %9 : i32 to index
    %11 = vector.load %arg3[%c0, %10] : memref<2x1024xf32, #tpu.memory_space<vmem>>, vector<2x128xf32>
    %c0_2 = arith.constant 0 : index
    %12 = arith.index_cast %9 : i32 to index
    %13 = vector.load %arg4[%c0_2, %12] : memref<2x1024xf32, #tpu.memory_space<vmem>>, vector<2x128xf32>
    %c1024_i32_3 = arith.constant 1024 : i32
    %14 = arith.subi %c1024_i32_3, %5 : i32
    %15 = arith.subi %14, %9 : i32
    %16 = vector.broadcast %15 : i32 to vector<2x128xi32>
    %17 = arith.cmpi slt, %6, %16 : vector<2x128xi32>
    %cst_4 = arith.constant -1.000000e+09 : f32
    %18 = vector.broadcast %cst_4 : f32 to vector<2x128xf32>
    %19 = arith.select %17, %11, %18 : vector<2x128xi1>, vector<2x128xf32>
    %cst_5 = arith.constant 0.000000e+00 : f32
    %20 = vector.broadcast %cst_5 : f32 to vector<2x128xf32>
    %21 = arith.select %17, %13, %20 : vector<2x128xi1>, vector<2x128xf32>
    %22 = math.absf %19 : vector<2x128xf32>
    %cst_6 = arith.constant 0.000000e+00 : f32
    %23 = vector.broadcast %cst_6 : f32 to vector<2x128xf32>
    %24 = arith.subf %23, %22 : vector<2x128xf32>
    %25 = math.exp %24 : vector<2x128xf32>
    %cst_7 = arith.constant 1.000000e+00 : f32
    %26 = vector.broadcast %cst_7 : f32 to vector<2x128xf32>
    %27 = arith.addf %26, %25 : vector<2x128xf32>
    %28 = tpu.reciprocal %27 : vector<2x128xf32> -> vector<2x128xf32>
    %cst_8 = arith.constant 0.000000e+00 : f32
    %29 = vector.broadcast %cst_8 : f32 to vector<2x128xf32>
    %30 = arith.cmpf oge, %19, %29 : vector<2x128xf32>
    %31 = arith.mulf %25, %28 : vector<2x128xf32>
    %32 = arith.select %30, %28, %31 : vector<2x128xi1>, vector<2x128xf32>
    %33 = arith.mulf %32, %21 : vector<2x128xf32>
    %34 = arith.addf %7, %33 : vector<2x128xf32>
    %35 = arith.addf %7, %32 : vector<2x128xf32>
    %36 = arith.addf %7, %21 : vector<2x128xf32>
    %cst_9 = arith.constant 0.000000e+00 : f32
    %37 = vector.broadcast %cst_9 : f32 to vector<2x128xf32>
    %38 = arith.maximumf %19, %37 : vector<2x128xf32>
    %39 = arith.mulf %19, %21 : vector<2x128xf32>
    %40 = arith.subf %38, %39 : vector<2x128xf32>
    %cst_10 = arith.constant 1.000000e+00 : f32
    %41 = vector.broadcast %cst_10 : f32 to vector<2x128xf32>
    %42 = arith.addf %41, %25 : vector<2x128xf32>
    %43 = math.log %42 : vector<2x128xf32>
    %44 = arith.addf %40, %43 : vector<2x128xf32>
    %45 = arith.addf %7, %44 : vector<2x128xf32>
    %c1_i32_11 = arith.constant 1 : i32
    %c128_i32_12 = arith.constant 128 : i32
    %46 = arith.muli %c1_i32_11, %c128_i32_12 : i32
    %47 = tpu.assume_multiple %46, 128 : i32
    %c0_13 = arith.constant 0 : index
    %48 = arith.index_cast %47 : i32 to index
    %49 = vector.load %arg3[%c0_13, %48] : memref<2x1024xf32, #tpu.memory_space<vmem>>, vector<2x128xf32>
    %c0_14 = arith.constant 0 : index
    %50 = arith.index_cast %47 : i32 to index
    %51 = vector.load %arg4[%c0_14, %50] : memref<2x1024xf32, #tpu.memory_space<vmem>>, vector<2x128xf32>
    %c1024_i32_15 = arith.constant 1024 : i32
    %52 = arith.subi %c1024_i32_15, %5 : i32
    %53 = arith.subi %52, %47 : i32
    %54 = vector.broadcast %53 : i32 to vector<2x128xi32>
    %55 = arith.cmpi slt, %6, %54 : vector<2x128xi32>
    %cst_16 = arith.constant -1.000000e+09 : f32
    %56 = vector.broadcast %cst_16 : f32 to vector<2x128xf32>
    %57 = arith.select %55, %49, %56 : vector<2x128xi1>, vector<2x128xf32>
    %cst_17 = arith.constant 0.000000e+00 : f32
    %58 = vector.broadcast %cst_17 : f32 to vector<2x128xf32>
    %59 = arith.select %55, %51, %58 : vector<2x128xi1>, vector<2x128xf32>
    %60 = math.absf %57 : vector<2x128xf32>
    %cst_18 = arith.constant 0.000000e+00 : f32
    %61 = vector.broadcast %cst_18 : f32 to vector<2x128xf32>
    %62 = arith.subf %61, %60 : vector<2x128xf32>
    %63 = math.exp %62 : vector<2x128xf32>
    %cst_19 = arith.constant 1.000000e+00 : f32
    %64 = vector.broadcast %cst_19 : f32 to vector<2x128xf32>
    %65 = arith.addf %64, %63 : vector<2x128xf32>
    %66 = tpu.reciprocal %65 : vector<2x128xf32> -> vector<2x128xf32>
    %cst_20 = arith.constant 0.000000e+00 : f32
    %67 = vector.broadcast %cst_20 : f32 to vector<2x128xf32>
    %68 = arith.cmpf oge, %57, %67 : vector<2x128xf32>
    %69 = arith.mulf %63, %66 : vector<2x128xf32>
    %70 = arith.select %68, %66, %69 : vector<2x128xi1>, vector<2x128xf32>
    %71 = arith.mulf %70, %59 : vector<2x128xf32>
    %72 = arith.addf %34, %71 : vector<2x128xf32>
    %73 = arith.addf %35, %70 : vector<2x128xf32>
    %74 = arith.addf %36, %59 : vector<2x128xf32>
    %cst_21 = arith.constant 0.000000e+00 : f32
    %75 = vector.broadcast %cst_21 : f32 to vector<2x128xf32>
    %76 = arith.maximumf %57, %75 : vector<2x128xf32>
    %77 = arith.mulf %57, %59 : vector<2x128xf32>
    %78 = arith.subf %76, %77 : vector<2x128xf32>
    %cst_22 = arith.constant 1.000000e+00 : f32
    %79 = vector.broadcast %cst_22 : f32 to vector<2x128xf32>
    %80 = arith.addf %79, %63 : vector<2x128xf32>
    %81 = math.log %80 : vector<2x128xf32>
    %82 = arith.addf %78, %81 : vector<2x128xf32>
    %83 = arith.addf %45, %82 : vector<2x128xf32>
    %c2_i32 = arith.constant 2 : i32
    %c128_i32_23 = arith.constant 128 : i32
    %84 = arith.muli %c2_i32, %c128_i32_23 : i32
    %85 = tpu.assume_multiple %84, 128 : i32
    %c0_24 = arith.constant 0 : index
    %86 = arith.index_cast %85 : i32 to index
    %87 = vector.load %arg3[%c0_24, %86] : memref<2x1024xf32, #tpu.memory_space<vmem>>, vector<2x128xf32>
    %c0_25 = arith.constant 0 : index
    %88 = arith.index_cast %85 : i32 to index
    %89 = vector.load %arg4[%c0_25, %88] : memref<2x1024xf32, #tpu.memory_space<vmem>>, vector<2x128xf32>
    %c1024_i32_26 = arith.constant 1024 : i32
    %90 = arith.subi %c1024_i32_26, %5 : i32
    %91 = arith.subi %90, %85 : i32
    %92 = vector.broadcast %91 : i32 to vector<2x128xi32>
    %93 = arith.cmpi slt, %6, %92 : vector<2x128xi32>
    %cst_27 = arith.constant -1.000000e+09 : f32
    %94 = vector.broadcast %cst_27 : f32 to vector<2x128xf32>
    %95 = arith.select %93, %87, %94 : vector<2x128xi1>, vector<2x128xf32>
    %cst_28 = arith.constant 0.000000e+00 : f32
    %96 = vector.broadcast %cst_28 : f32 to vector<2x128xf32>
    %97 = arith.select %93, %89, %96 : vector<2x128xi1>, vector<2x128xf32>
    %98 = math.absf %95 : vector<2x128xf32>
    %cst_29 = arith.constant 0.000000e+00 : f32
    %99 = vector.broadcast %cst_29 : f32 to vector<2x128xf32>
    %100 = arith.subf %99, %98 : vector<2x128xf32>
    %101 = math.exp %100 : vector<2x128xf32>
    %cst_30 = arith.constant 1.000000e+00 : f32
    %102 = vector.broadcast %cst_30 : f32 to vector<2x128xf32>
    %103 = arith.addf %102, %101 : vector<2x128xf32>
    %104 = tpu.reciprocal %103 : vector<2x128xf32> -> vector<2x128xf32>
    %cst_31 = arith.constant 0.000000e+00 : f32
    %105 = vector.broadcast %cst_31 : f32 to vector<2x128xf32>
    %106 = arith.cmpf oge, %95, %105 : vector<2x128xf32>
    %107 = arith.mulf %101, %104 : vector<2x128xf32>
    %108 = arith.select %106, %104, %107 : vector<2x128xi1>, vector<2x128xf32>
    %109 = arith.mulf %108, %97 : vector<2x128xf32>
    %110 = arith.addf %72, %109 : vector<2x128xf32>
    %111 = arith.addf %73, %108 : vector<2x128xf32>
    %112 = arith.addf %74, %97 : vector<2x128xf32>
    %cst_32 = arith.constant 0.000000e+00 : f32
    %113 = vector.broadcast %cst_32 : f32 to vector<2x128xf32>
    %114 = arith.maximumf %95, %113 : vector<2x128xf32>
    %115 = arith.mulf %95, %97 : vector<2x128xf32>
    %116 = arith.subf %114, %115 : vector<2x128xf32>
    %cst_33 = arith.constant 1.000000e+00 : f32
    %117 = vector.broadcast %cst_33 : f32 to vector<2x128xf32>
    %118 = arith.addf %117, %101 : vector<2x128xf32>
    %119 = math.log %118 : vector<2x128xf32>
    %120 = arith.addf %116, %119 : vector<2x128xf32>
    %121 = arith.addf %83, %120 : vector<2x128xf32>
    %c3_i32 = arith.constant 3 : i32
    %c128_i32_34 = arith.constant 128 : i32
    %122 = arith.muli %c3_i32, %c128_i32_34 : i32
    %123 = tpu.assume_multiple %122, 128 : i32
    %c0_35 = arith.constant 0 : index
    %124 = arith.index_cast %123 : i32 to index
    %125 = vector.load %arg3[%c0_35, %124] : memref<2x1024xf32, #tpu.memory_space<vmem>>, vector<2x128xf32>
    %c0_36 = arith.constant 0 : index
    %126 = arith.index_cast %123 : i32 to index
    %127 = vector.load %arg4[%c0_36, %126] : memref<2x1024xf32, #tpu.memory_space<vmem>>, vector<2x128xf32>
    %c1024_i32_37 = arith.constant 1024 : i32
    %128 = arith.subi %c1024_i32_37, %5 : i32
    %129 = arith.subi %128, %123 : i32
    %130 = vector.broadcast %129 : i32 to vector<2x128xi32>
    %131 = arith.cmpi slt, %6, %130 : vector<2x128xi32>
    %cst_38 = arith.constant -1.000000e+09 : f32
    %132 = vector.broadcast %cst_38 : f32 to vector<2x128xf32>
    %133 = arith.select %131, %125, %132 : vector<2x128xi1>, vector<2x128xf32>
    %cst_39 = arith.constant 0.000000e+00 : f32
    %134 = vector.broadcast %cst_39 : f32 to vector<2x128xf32>
    %135 = arith.select %131, %127, %134 : vector<2x128xi1>, vector<2x128xf32>
    %136 = math.absf %133 : vector<2x128xf32>
    %cst_40 = arith.constant 0.000000e+00 : f32
    %137 = vector.broadcast %cst_40 : f32 to vector<2x128xf32>
    %138 = arith.subf %137, %136 : vector<2x128xf32>
    %139 = math.exp %138 : vector<2x128xf32>
    %cst_41 = arith.constant 1.000000e+00 : f32
    %140 = vector.broadcast %cst_41 : f32 to vector<2x128xf32>
    %141 = arith.addf %140, %139 : vector<2x128xf32>
    %142 = tpu.reciprocal %141 : vector<2x128xf32> -> vector<2x128xf32>
    %cst_42 = arith.constant 0.000000e+00 : f32
    %143 = vector.broadcast %cst_42 : f32 to vector<2x128xf32>
    %144 = arith.cmpf oge, %133, %143 : vector<2x128xf32>
    %145 = arith.mulf %139, %142 : vector<2x128xf32>
    %146 = arith.select %144, %142, %145 : vector<2x128xi1>, vector<2x128xf32>
    %147 = arith.mulf %146, %135 : vector<2x128xf32>
    %148 = arith.addf %110, %147 : vector<2x128xf32>
    %149 = arith.addf %111, %146 : vector<2x128xf32>
    %150 = arith.addf %112, %135 : vector<2x128xf32>
    %cst_43 = arith.constant 0.000000e+00 : f32
    %151 = vector.broadcast %cst_43 : f32 to vector<2x128xf32>
    %152 = arith.maximumf %133, %151 : vector<2x128xf32>
    %153 = arith.mulf %133, %135 : vector<2x128xf32>
    %154 = arith.subf %152, %153 : vector<2x128xf32>
    %cst_44 = arith.constant 1.000000e+00 : f32
    %155 = vector.broadcast %cst_44 : f32 to vector<2x128xf32>
    %156 = arith.addf %155, %139 : vector<2x128xf32>
    %157 = math.log %156 : vector<2x128xf32>
    %158 = arith.addf %154, %157 : vector<2x128xf32>
    %159 = arith.addf %121, %158 : vector<2x128xf32>
    %c4_i32 = arith.constant 4 : i32
    %c128_i32_45 = arith.constant 128 : i32
    %160 = arith.muli %c4_i32, %c128_i32_45 : i32
    %161 = tpu.assume_multiple %160, 128 : i32
    %c0_46 = arith.constant 0 : index
    %162 = arith.index_cast %161 : i32 to index
    %163 = vector.load %arg3[%c0_46, %162] : memref<2x1024xf32, #tpu.memory_space<vmem>>, vector<2x128xf32>
    %c0_47 = arith.constant 0 : index
    %164 = arith.index_cast %161 : i32 to index
    %165 = vector.load %arg4[%c0_47, %164] : memref<2x1024xf32, #tpu.memory_space<vmem>>, vector<2x128xf32>
    %c1024_i32_48 = arith.constant 1024 : i32
    %166 = arith.subi %c1024_i32_48, %5 : i32
    %167 = arith.subi %166, %161 : i32
    %168 = vector.broadcast %167 : i32 to vector<2x128xi32>
    %169 = arith.cmpi slt, %6, %168 : vector<2x128xi32>
    %cst_49 = arith.constant -1.000000e+09 : f32
    %170 = vector.broadcast %cst_49 : f32 to vector<2x128xf32>
    %171 = arith.select %169, %163, %170 : vector<2x128xi1>, vector<2x128xf32>
    %cst_50 = arith.constant 0.000000e+00 : f32
    %172 = vector.broadcast %cst_50 : f32 to vector<2x128xf32>
    %173 = arith.select %169, %165, %172 : vector<2x128xi1>, vector<2x128xf32>
    %174 = math.absf %171 : vector<2x128xf32>
    %cst_51 = arith.constant 0.000000e+00 : f32
    %175 = vector.broadcast %cst_51 : f32 to vector<2x128xf32>
    %176 = arith.subf %175, %174 : vector<2x128xf32>
    %177 = math.exp %176 : vector<2x128xf32>
    %cst_52 = arith.constant 1.000000e+00 : f32
    %178 = vector.broadcast %cst_52 : f32 to vector<2x128xf32>
    %179 = arith.addf %178, %177 : vector<2x128xf32>
    %180 = tpu.reciprocal %179 : vector<2x128xf32> -> vector<2x128xf32>
    %cst_53 = arith.constant 0.000000e+00 : f32
    %181 = vector.broadcast %cst_53 : f32 to vector<2x128xf32>
    %182 = arith.cmpf oge, %171, %181 : vector<2x128xf32>
    %183 = arith.mulf %177, %180 : vector<2x128xf32>
    %184 = arith.select %182, %180, %183 : vector<2x128xi1>, vector<2x128xf32>
    %185 = arith.mulf %184, %173 : vector<2x128xf32>
    %186 = arith.addf %148, %185 : vector<2x128xf32>
    %187 = arith.addf %149, %184 : vector<2x128xf32>
    %188 = arith.addf %150, %173 : vector<2x128xf32>
    %cst_54 = arith.constant 0.000000e+00 : f32
    %189 = vector.broadcast %cst_54 : f32 to vector<2x128xf32>
    %190 = arith.maximumf %171, %189 : vector<2x128xf32>
    %191 = arith.mulf %171, %173 : vector<2x128xf32>
    %192 = arith.subf %190, %191 : vector<2x128xf32>
    %cst_55 = arith.constant 1.000000e+00 : f32
    %193 = vector.broadcast %cst_55 : f32 to vector<2x128xf32>
    %194 = arith.addf %193, %177 : vector<2x128xf32>
    %195 = math.log %194 : vector<2x128xf32>
    %196 = arith.addf %192, %195 : vector<2x128xf32>
    %197 = arith.addf %159, %196 : vector<2x128xf32>
    %c5_i32 = arith.constant 5 : i32
    %c128_i32_56 = arith.constant 128 : i32
    %198 = arith.muli %c5_i32, %c128_i32_56 : i32
    %199 = tpu.assume_multiple %198, 128 : i32
    %c0_57 = arith.constant 0 : index
    %200 = arith.index_cast %199 : i32 to index
    %201 = vector.load %arg3[%c0_57, %200] : memref<2x1024xf32, #tpu.memory_space<vmem>>, vector<2x128xf32>
    %c0_58 = arith.constant 0 : index
    %202 = arith.index_cast %199 : i32 to index
    %203 = vector.load %arg4[%c0_58, %202] : memref<2x1024xf32, #tpu.memory_space<vmem>>, vector<2x128xf32>
    %c1024_i32_59 = arith.constant 1024 : i32
    %204 = arith.subi %c1024_i32_59, %5 : i32
    %205 = arith.subi %204, %199 : i32
    %206 = vector.broadcast %205 : i32 to vector<2x128xi32>
    %207 = arith.cmpi slt, %6, %206 : vector<2x128xi32>
    %cst_60 = arith.constant -1.000000e+09 : f32
    %208 = vector.broadcast %cst_60 : f32 to vector<2x128xf32>
    %209 = arith.select %207, %201, %208 : vector<2x128xi1>, vector<2x128xf32>
    %cst_61 = arith.constant 0.000000e+00 : f32
    %210 = vector.broadcast %cst_61 : f32 to vector<2x128xf32>
    %211 = arith.select %207, %203, %210 : vector<2x128xi1>, vector<2x128xf32>
    %212 = math.absf %209 : vector<2x128xf32>
    %cst_62 = arith.constant 0.000000e+00 : f32
    %213 = vector.broadcast %cst_62 : f32 to vector<2x128xf32>
    %214 = arith.subf %213, %212 : vector<2x128xf32>
    %215 = math.exp %214 : vector<2x128xf32>
    %cst_63 = arith.constant 1.000000e+00 : f32
    %216 = vector.broadcast %cst_63 : f32 to vector<2x128xf32>
    %217 = arith.addf %216, %215 : vector<2x128xf32>
    %218 = tpu.reciprocal %217 : vector<2x128xf32> -> vector<2x128xf32>
    %cst_64 = arith.constant 0.000000e+00 : f32
    %219 = vector.broadcast %cst_64 : f32 to vector<2x128xf32>
    %220 = arith.cmpf oge, %209, %219 : vector<2x128xf32>
    %221 = arith.mulf %215, %218 : vector<2x128xf32>
    %222 = arith.select %220, %218, %221 : vector<2x128xi1>, vector<2x128xf32>
    %223 = arith.mulf %222, %211 : vector<2x128xf32>
    %224 = arith.addf %186, %223 : vector<2x128xf32>
    %225 = arith.addf %187, %222 : vector<2x128xf32>
    %226 = arith.addf %188, %211 : vector<2x128xf32>
    %cst_65 = arith.constant 0.000000e+00 : f32
    %227 = vector.broadcast %cst_65 : f32 to vector<2x128xf32>
    %228 = arith.maximumf %209, %227 : vector<2x128xf32>
    %229 = arith.mulf %209, %211 : vector<2x128xf32>
    %230 = arith.subf %228, %229 : vector<2x128xf32>
    %cst_66 = arith.constant 1.000000e+00 : f32
    %231 = vector.broadcast %cst_66 : f32 to vector<2x128xf32>
    %232 = arith.addf %231, %215 : vector<2x128xf32>
    %233 = math.log %232 : vector<2x128xf32>
    %234 = arith.addf %230, %233 : vector<2x128xf32>
    %235 = arith.addf %197, %234 : vector<2x128xf32>
    %c6_i32 = arith.constant 6 : i32
    %c128_i32_67 = arith.constant 128 : i32
    %236 = arith.muli %c6_i32, %c128_i32_67 : i32
    %237 = tpu.assume_multiple %236, 128 : i32
    %c0_68 = arith.constant 0 : index
    %238 = arith.index_cast %237 : i32 to index
    %239 = vector.load %arg3[%c0_68, %238] : memref<2x1024xf32, #tpu.memory_space<vmem>>, vector<2x128xf32>
    %c0_69 = arith.constant 0 : index
    %240 = arith.index_cast %237 : i32 to index
    %241 = vector.load %arg4[%c0_69, %240] : memref<2x1024xf32, #tpu.memory_space<vmem>>, vector<2x128xf32>
    %c1024_i32_70 = arith.constant 1024 : i32
    %242 = arith.subi %c1024_i32_70, %5 : i32
    %243 = arith.subi %242, %237 : i32
    %244 = vector.broadcast %243 : i32 to vector<2x128xi32>
    %245 = arith.cmpi slt, %6, %244 : vector<2x128xi32>
    %cst_71 = arith.constant -1.000000e+09 : f32
    %246 = vector.broadcast %cst_71 : f32 to vector<2x128xf32>
    %247 = arith.select %245, %239, %246 : vector<2x128xi1>, vector<2x128xf32>
    %cst_72 = arith.constant 0.000000e+00 : f32
    %248 = vector.broadcast %cst_72 : f32 to vector<2x128xf32>
    %249 = arith.select %245, %241, %248 : vector<2x128xi1>, vector<2x128xf32>
    %250 = math.absf %247 : vector<2x128xf32>
    %cst_73 = arith.constant 0.000000e+00 : f32
    %251 = vector.broadcast %cst_73 : f32 to vector<2x128xf32>
    %252 = arith.subf %251, %250 : vector<2x128xf32>
    %253 = math.exp %252 : vector<2x128xf32>
    %cst_74 = arith.constant 1.000000e+00 : f32
    %254 = vector.broadcast %cst_74 : f32 to vector<2x128xf32>
    %255 = arith.addf %254, %253 : vector<2x128xf32>
    %256 = tpu.reciprocal %255 : vector<2x128xf32> -> vector<2x128xf32>
    %cst_75 = arith.constant 0.000000e+00 : f32
    %257 = vector.broadcast %cst_75 : f32 to vector<2x128xf32>
    %258 = arith.cmpf oge, %247, %257 : vector<2x128xf32>
    %259 = arith.mulf %253, %256 : vector<2x128xf32>
    %260 = arith.select %258, %256, %259 : vector<2x128xi1>, vector<2x128xf32>
    %261 = arith.mulf %260, %249 : vector<2x128xf32>
    %262 = arith.addf %224, %261 : vector<2x128xf32>
    %263 = arith.addf %225, %260 : vector<2x128xf32>
    %264 = arith.addf %226, %249 : vector<2x128xf32>
    %cst_76 = arith.constant 0.000000e+00 : f32
    %265 = vector.broadcast %cst_76 : f32 to vector<2x128xf32>
    %266 = arith.maximumf %247, %265 : vector<2x128xf32>
    %267 = arith.mulf %247, %249 : vector<2x128xf32>
    %268 = arith.subf %266, %267 : vector<2x128xf32>
    %cst_77 = arith.constant 1.000000e+00 : f32
    %269 = vector.broadcast %cst_77 : f32 to vector<2x128xf32>
    %270 = arith.addf %269, %253 : vector<2x128xf32>
    %271 = math.log %270 : vector<2x128xf32>
    %272 = arith.addf %268, %271 : vector<2x128xf32>
    %273 = arith.addf %235, %272 : vector<2x128xf32>
    %c7_i32 = arith.constant 7 : i32
    %c128_i32_78 = arith.constant 128 : i32
    %274 = arith.muli %c7_i32, %c128_i32_78 : i32
    %275 = tpu.assume_multiple %274, 128 : i32
    %c0_79 = arith.constant 0 : index
    %276 = arith.index_cast %275 : i32 to index
    %277 = vector.load %arg3[%c0_79, %276] : memref<2x1024xf32, #tpu.memory_space<vmem>>, vector<2x128xf32>
    %c0_80 = arith.constant 0 : index
    %278 = arith.index_cast %275 : i32 to index
    %279 = vector.load %arg4[%c0_80, %278] : memref<2x1024xf32, #tpu.memory_space<vmem>>, vector<2x128xf32>
    %c1024_i32_81 = arith.constant 1024 : i32
    %280 = arith.subi %c1024_i32_81, %5 : i32
    %281 = arith.subi %280, %275 : i32
    %282 = vector.broadcast %281 : i32 to vector<2x128xi32>
    %283 = arith.cmpi slt, %6, %282 : vector<2x128xi32>
    %cst_82 = arith.constant -1.000000e+09 : f32
    %284 = vector.broadcast %cst_82 : f32 to vector<2x128xf32>
    %285 = arith.select %283, %277, %284 : vector<2x128xi1>, vector<2x128xf32>
    %cst_83 = arith.constant 0.000000e+00 : f32
    %286 = vector.broadcast %cst_83 : f32 to vector<2x128xf32>
    %287 = arith.select %283, %279, %286 : vector<2x128xi1>, vector<2x128xf32>
    %288 = math.absf %285 : vector<2x128xf32>
    %cst_84 = arith.constant 0.000000e+00 : f32
    %289 = vector.broadcast %cst_84 : f32 to vector<2x128xf32>
    %290 = arith.subf %289, %288 : vector<2x128xf32>
    %291 = math.exp %290 : vector<2x128xf32>
    %cst_85 = arith.constant 1.000000e+00 : f32
    %292 = vector.broadcast %cst_85 : f32 to vector<2x128xf32>
    %293 = arith.addf %292, %291 : vector<2x128xf32>
    %294 = tpu.reciprocal %293 : vector<2x128xf32> -> vector<2x128xf32>
    %cst_86 = arith.constant 0.000000e+00 : f32
    %295 = vector.broadcast %cst_86 : f32 to vector<2x128xf32>
    %296 = arith.cmpf oge, %285, %295 : vector<2x128xf32>
    %297 = arith.mulf %291, %294 : vector<2x128xf32>
    %298 = arith.select %296, %294, %297 : vector<2x128xi1>, vector<2x128xf32>
    %299 = arith.mulf %298, %287 : vector<2x128xf32>
    %300 = arith.addf %262, %299 : vector<2x128xf32>
    %301 = arith.addf %263, %298 : vector<2x128xf32>
    %302 = arith.addf %264, %287 : vector<2x128xf32>
    %cst_87 = arith.constant 0.000000e+00 : f32
    %303 = vector.broadcast %cst_87 : f32 to vector<2x128xf32>
    %304 = arith.maximumf %285, %303 : vector<2x128xf32>
    %305 = arith.mulf %285, %287 : vector<2x128xf32>
    %306 = arith.subf %304, %305 : vector<2x128xf32>
    %cst_88 = arith.constant 1.000000e+00 : f32
    %307 = vector.broadcast %cst_88 : f32 to vector<2x128xf32>
    %308 = arith.addf %307, %291 : vector<2x128xf32>
    %309 = math.log %308 : vector<2x128xf32>
    %310 = arith.addf %306, %309 : vector<2x128xf32>
    %311 = arith.addf %273, %310 : vector<2x128xf32>
    %c8_i32 = arith.constant 8 : i32
    %c0_89 = arith.constant 0 : index
    %c0_90 = arith.constant 0 : index
    %c0_91 = arith.constant 0 : index
    %312 = vector.load %arg6[%c0_89, %c0_90, %c0_91] : memref<4x2x128xf32, #tpu.memory_space<vmem>>, vector<1x2x128xf32>
    %313 = vector.shape_cast %312 : vector<1x2x128xf32> to vector<2x128xf32>
    %314 = arith.addf %313, %311 : vector<2x128xf32>
    %c0_92 = arith.constant 0 : index
    %c0_93 = arith.constant 0 : index
    %c0_94 = arith.constant 0 : index
    %315 = vector.load %arg6[%c0_92, %c0_93, %c0_94] : memref<4x2x128xf32, #tpu.memory_space<vmem>>, vector<1x2x128xf32>
    %316 = vector.shape_cast %315 : vector<1x2x128xf32> to vector<2x128xf32>
    %317 = vector.shape_cast %314 : vector<2x128xf32> to vector<1x2x128xf32>
    tpu.vector_store %arg6[%c0_92, %c0_93, %c0_94], %317 {strides = array<i32>} : memref<4x2x128xf32, #tpu.memory_space<vmem>>, vector<1x2x128xf32>,
    %c1 = arith.constant 1 : index
    %c0_95 = arith.constant 0 : index
    %c0_96 = arith.constant 0 : index
    %318 = vector.load %arg6[%c1, %c0_95, %c0_96] : memref<4x2x128xf32, #tpu.memory_space<vmem>>, vector<1x2x128xf32>
    %319 = vector.shape_cast %318 : vector<1x2x128xf32> to vector<2x128xf32>
    %320 = arith.addf %319, %300 : vector<2x128xf32>
    %c1_97 = arith.constant 1 : index
    %c0_98 = arith.constant 0 : index
    %c0_99 = arith.constant 0 : index
    %321 = vector.load %arg6[%c1_97, %c0_98, %c0_99] : memref<4x2x128xf32, #tpu.memory_space<vmem>>, vector<1x2x128xf32>
    %322 = vector.shape_cast %321 : vector<1x2x128xf32> to vector<2x128xf32>
    %323 = vector.shape_cast %320 : vector<2x128xf32> to vector<1x2x128xf32>
    tpu.vector_store %arg6[%c1_97, %c0_98, %c0_99], %323 {strides = array<i32>} : memref<4x2x128xf32, #tpu.memory_space<vmem>>, vector<1x2x128xf32>,
    %c2 = arith.constant 2 : index
    %c0_100 = arith.constant 0 : index
    %c0_101 = arith.constant 0 : index
    %324 = vector.load %arg6[%c2, %c0_100, %c0_101] : memref<4x2x128xf32, #tpu.memory_space<vmem>>, vector<1x2x128xf32>
    %325 = vector.shape_cast %324 : vector<1x2x128xf32> to vector<2x128xf32>
    %326 = arith.addf %325, %301 : vector<2x128xf32>
    %c2_102 = arith.constant 2 : index
    %c0_103 = arith.constant 0 : index
    %c0_104 = arith.constant 0 : index
    %327 = vector.load %arg6[%c2_102, %c0_103, %c0_104] : memref<4x2x128xf32, #tpu.memory_space<vmem>>, vector<1x2x128xf32>
    %328 = vector.shape_cast %327 : vector<1x2x128xf32> to vector<2x128xf32>
    %329 = vector.shape_cast %326 : vector<2x128xf32> to vector<1x2x128xf32>
    tpu.vector_store %arg6[%c2_102, %c0_103, %c0_104], %329 {strides = array<i32>} : memref<4x2x128xf32, #tpu.memory_space<vmem>>, vector<1x2x128xf32>,
    %c3 = arith.constant 3 : index
    %c0_105 = arith.constant 0 : index
    %c0_106 = arith.constant 0 : index
    %330 = vector.load %arg6[%c3, %c0_105, %c0_106] : memref<4x2x128xf32, #tpu.memory_space<vmem>>, vector<1x2x128xf32>
    %331 = vector.shape_cast %330 : vector<1x2x128xf32> to vector<2x128xf32>
    %332 = arith.addf %331, %302 : vector<2x128xf32>
    %c3_107 = arith.constant 3 : index
    %c0_108 = arith.constant 0 : index
    %c0_109 = arith.constant 0 : index
    %333 = vector.load %arg6[%c3_107, %c0_108, %c0_109] : memref<4x2x128xf32, #tpu.memory_space<vmem>>, vector<1x2x128xf32>
    %334 = vector.shape_cast %333 : vector<1x2x128xf32> to vector<2x128xf32>
    %335 = vector.shape_cast %332 : vector<2x128xf32> to vector<1x2x128xf32>
    tpu.vector_store %arg6[%c3_107, %c0_108, %c0_109], %335 {strides = array<i32>} : memref<4x2x128xf32, #tpu.memory_space<vmem>>, vector<1x2x128xf32>,
    %c0_i32_110 = arith.constant 0 : i32
    %336 = arith.cmpi eq, %arg2, %c0_i32_110 : i32
    %337 = arith.extui %336 : i1 to i32
    %c0_i32_111 = arith.constant 0 : i32
    %338 = arith.cmpi ne, %337, %c0_i32_111 : i32
    scf.if %338 {
      %c0_112 = arith.constant 0 : index
      %c0_113 = arith.constant 0 : index
      %c0_114 = arith.constant 0 : index
      %339 = vector.load %arg6[%c0_112, %c0_113, %c0_114] : memref<4x2x128xf32, #tpu.memory_space<vmem>>, vector<4x2x128xf32>
      %cst_115 = arith.constant dense<0.000000e+00> : vector<4x2xf32>
      %340 = vector.multi_reduction <add>, %339, %cst_115 [2] : vector<4x2x128xf32> to vector<4x2xf32>
      %c0_116 = arith.constant 0 : index
      %c0_117 = arith.constant 0 : index
      %c0_118 = arith.constant 0 : index
      %c0_119 = arith.constant 0 : index
      %341 = vector.load %arg5[%c0_116, %c0_117, %c0_118, %c0_119] : memref<1x1x4x2xf32, #tpu.memory_space<vmem>>, vector<1x1x4x2xf32>
      %342 = vector.shape_cast %341 : vector<1x1x4x2xf32> to vector<4x2xf32>
      %343 = vector.shape_cast %340 : vector<4x2xf32> to vector<1x1x4x2xf32>
      tpu.vector_store %arg5[%c0_116, %c0_117, %c0_118, %c0_119], %343 {strides = array<i32>} : memref<1x1x4x2xf32, #tpu.memory_space<vmem>>, vector<1x1x4x2xf32>,
    } else {
    }
    return
  }
  func.func @transform_0(%arg0: i32, %arg1: i32, %arg2: i32) -> (i32, i32) {
    %c1_i32 = arith.constant 1 : i32
    %0 = arith.muli %arg0, %c1_i32 : i32
    %1 = arith.addi %0, %arg2 : i32
    %c0_i32 = arith.constant 0 : i32
    %2 = arith.minsi %1, %c0_i32 : i32
    %c0_i32_0 = arith.constant 0 : i32
    return %arg1, %2 : i32, i32
  }
  func.func @transform_1(%arg0: i32, %arg1: i32, %arg2: i32) -> (i32, i32) {
    %c1_i32 = arith.constant 1 : i32
    %0 = arith.muli %arg0, %c1_i32 : i32
    %1 = arith.addi %0, %arg2 : i32
    %c0_i32 = arith.constant 0 : i32
    %2 = arith.minsi %1, %c0_i32 : i32
    %c0_i32_0 = arith.constant 0 : i32
    return %arg1, %2 : i32, i32
  }
  func.func @transform_2(%arg0: i32, %arg1: i32, %arg2: i32) -> (i32, i32, i32, i32) {
    %c0_i32 = arith.constant 0 : i32
    %c0_i32_0 = arith.constant 0 : i32
    %c0_i32_1 = arith.constant 0 : i32
    return %arg0, %arg1, %c0_i32, %c0_i32_0 : i32, i32, i32, i32
  }
}

</mosaic_0001>

<llo_original>
// kernel: tpu_custom_call.1
$region0: #{tpu_custom_call.1}
  #allocation0 [shape = 'u32[]', space=smem, size = 0x4, offset = 0x4, fixed_abs, tag = 'smem constant byte address 0x4 - core index']
  #allocation1 [shape = 'u32[144,128]{1,0:T(1,128)}', space=vmem, size = 0x12000, scoped, tag = 'internal scratch']
  #allocation2 [shape = 'f32[4,2,128]{2,1,0:T(2,128)}', space=vmem, size = 0x1000, scoped, tag = 'scratch operand']
  %s0 = inlined_call_operand.hbm [shape: f32[2,1024], index: 0, kind: input, shape index: {}]
  %s1 = inlined_call_operand.hbm [shape: f32[2,1024], index: 1, kind: input, shape index: {}]
  %s2 = inlined_call_operand.vmem [shape: f32[1,1,4,2], index: 2, kind: output, shape index: {}]
  %s3 = sld [smem:[#allocation0]]
  $region34: #{tpu_custom_call.1} parent=0
    _
  %s5 = ssub.s32 1, %s3
  %s6 = scalar_select 0, %s5, %s3
  $region1: #{tpu_custom_call.1} parent=0
    #allocation3 [shape = 'u8[8192]{0}', space=vmem, size = 0x2000, scoped, tag = 'input window, operand 0, single buffered']
    #allocation4 [shape = 's32[1]{0}', space=sflag, size = 0x4, scoped, tag = 'scoped memory for tpu_custom_call.1']
    #allocation5 [shape = 'u8[8192]{0}', space=vmem, size = 0x2000, scoped, tag = 'input window, operand 1, single buffered']
    #allocation6 [shape = 's32[1]{0}', space=sflag, size = 0x4, scoped, tag = 'scoped memory for tpu_custom_call.1']
    %7 = vsyncpa [#allocation4], 0
    %8 = vsyncpa [#allocation6], 0
    // Predicated region
    $region2: #{tpu_custom_call.1} parent=1 // pred_check
      _
    $region3: #{tpu_custom_call.1} parent=1 // pred_check_branch
      %10 = sbr.rel (0) target = $region5
    $region4: #{tpu_custom_call.1} parent=1 // pred_region
      %s11 = sadd.s32 0, 0
      %p12 = scmp.lt.s32.totalorder %s11, 0
      %s13 = scalar_select %p12, %s11, 0
      %s14 = smul.u32 8, %s13
      %s16 = ssub.s32 256, 256
      %17 = vsyncadd [#allocation4], %s16
      %s18 = smul.addr %s14, 32
      %s19 = scalar_lea.hbm %s0, %s18
      %s21 = sshll.u32 [#allocation3], 4
      %s22 = int_to_ptr.vmem [resolvable:$true] %s21
      %24 = dma.hbm_to_vmem [thread:$0]  %s19, 256, %s22, [#allocation4]
    $region5: #{tpu_custom_call.1} parent=1 // pred_fallthru
      _
    // Predicated region
    $region6: #{tpu_custom_call.1} parent=1 // pred_check
      _
    $region7: #{tpu_custom_call.1} parent=1 // pred_check_branch
      %26 = sbr.rel (0) target = $region9
    $region8: #{tpu_custom_call.1} parent=1 // pred_region
      %s27 = sadd.s32 0, 0
      %p28 = scmp.lt.s32.totalorder %s27, 0
      %s29 = scalar_select %p28, %s27, 0
      %s30 = smul.u32 8, %s29
      %s32 = ssub.s32 256, 256
      %33 = vsyncadd [#allocation6], %s32
      %s34 = smul.addr %s30, 32
      %s35 = scalar_lea.hbm %s1, %s34
      %s37 = sshll.u32 [#allocation5], 4
      %s38 = int_to_ptr.vmem [resolvable:$true] %s37
      %40 = dma.hbm_to_vmem [thread:$0]  %s35, 256, %s38, [#allocation6]
    $region9: #{tpu_custom_call.1} parent=1 // pred_fallthru
      _
    // Predicated region
    $region10: #{tpu_custom_call.1} parent=1 // pred_check
      _
    $region11: #{tpu_custom_call.1} parent=1 // pred_check_branch
      %42 = sbr.rel (0) target = $region13
    $region12: #{tpu_custom_call.1} parent=1 // pred_region
      %43 = dma.done [#allocation4], 256
    $region13: #{tpu_custom_call.1} parent=1 // pred_fallthru
      _
    // Predicated region
    $region14: #{tpu_custom_call.1} parent=1 // pred_check
      _
    $region15: #{tpu_custom_call.1} parent=1 // pred_check_branch
      %45 = sbr.rel (0) target = $region17
    $region16: #{tpu_custom_call.1} parent=1 // pred_region
      %46 = dma.done [#allocation6], 256
    $region17: #{tpu_custom_call.1} parent=1 // pred_fallthru
      _
    %s47 = sadd.s32 0, 0
    %p48 = scmp.lt.s32.totalorder %s47, 0
    %s49 = scalar_select %p48, %s47, 0
    %s50 = smul.u32 8, %s49
    %s51 = sadd.s32 0, 0
    %p52 = scmp.lt.s32.totalorder %s51, 0
    %s53 = scalar_select %p52, %s51, 0
    %s54 = smul.u32 8, %s53
    %p55 = scmp.eq.s32.totalorder 0, 0
    // Predicated region
    $region18: #{tpu_custom_call.1} parent=1 // pred_check
      %p56 = pneg %p55
    $region19: #{tpu_custom_call.1} parent=1 // pred_check_branch
      %58 = sbr.rel (%p56) target = $region21
    $region20: #{tpu_custom_call.1} parent=1 // pred_region
      %59 = vst [vmem:[#allocation2] sm:$0x3] 0.0
      %60 = vst [vmem:[#allocation2 + $0x2] sm:$0x3] 0.0
      %61 = vst [vmem:[#allocation2 + $0x4] sm:$0x3] 0.0
      %62 = vst [vmem:[#allocation2 + $0x6] sm:$0x3] 0.0
    $region21: #{tpu_custom_call.1} parent=1 // pred_fallthru
      _
    %s63 = sadd.s32 0, 0
    %s64 = smul.u32 %s63, 1024
    %v65 = vlaneseq
    %v66 = vand.u32 %v65, 127
    %v67 = vld [vmem:[#allocation3] sm:$0x3]
    %v68 = vld [vmem:[#allocation5] sm:$0x3]
    %s69 = ssub.s32 1024, %s64
    %s70 = ssub.s32 %s69, 0
    %v71 = vstv %s70
    %vm72 = vcmp.lt.s32.totalorder %v66, %v71
    %v73 = vsel %vm72, %v67, -1e+09
    %v74 = vsel %vm72, %v68, 0.0
    %v75 = vand.u32 2147483647, %v73
    %v76 = vsub.f32 0.0, %v75
    %v77 = vmul.f32 %v76, 1.442695
    %v78 = vpow.pop %v77
    %v79 = vadd.f32 %v78, 1.0
    %v80 = vrcp.pop %v79
    %vm81 = vcmp.ge.f32.partialorder %v73, 0.0
    %v82 = vmul.f32 %v78, %v80
    %v83 = vsel %vm81, %v80, %v82
    %v84 = vmul.f32 %v83, %v74
    %v85 = vadd.f32 %v84, 0.0
    %v86 = vadd.f32 %v83, 0.0
    %v87 = vadd.f32 %v74, 0.0
    %v88 = vmax.f32 %v73, 0.0
    %v89 = vmul.f32 %v73, %v74
    %v90 = vsub.f32 %v88, %v89
    %v91 = vlog2.pop %v79
    %v92 = vmul.f32 %v91, 0.6931472
    %v93 = vadd.f32 %v90, %v92
    %v94 = vadd.f32 %v93, 0.0
    %s95 = scalar_lea.vmem [#allocation3], 2
    %v96 = vld [vmem:[%s95] sm:$0x3]
    %s97 = scalar_lea.vmem [#allocation5], 2
    %v98 = vld [vmem:[%s97] sm:$0x3]
    %s99 = ssub.s32 %s69, 128
    %v100 = vstv %s99
    %vm101 = vcmp.lt.s32.totalorder %v66, %v100
    %v102 = vsel %vm101, %v96, -1e+09
    %v103 = vsel %vm101, %v98, 0.0
    %v104 = vand.u32 2147483647, %v102
    %v105 = vsub.f32 0.0, %v104
    %v106 = vmul.f32 %v105, 1.442695
    %v107 = vpow.pop %v106
    %v108 = vadd.f32 %v107, 1.0
    %v109 = vrcp.pop %v108
    %vm110 = vcmp.ge.f32.partialorder %v102, 0.0
    %v111 = vmul.f32 %v107, %v109
    %v112 = vsel %vm110, %v109, %v111
    %v113 = vmul.f32 %v112, %v103
    %v114 = vadd.f32 %v85, %v113
    %v115 = vadd.f32 %v86, %v112
    %v116 = vadd.f32 %v87, %v103
    %v117 = vmax.f32 %v102, 0.0
    %v118 = vmul.f32 %v102, %v103
    %v119 = vsub.f32 %v117, %v118
    %v120 = vlog2.pop %v108
    %v121 = vmul.f32 %v120, 0.6931472
    %v122 = vadd.f32 %v119, %v121
    %v123 = vadd.f32 %v94, %v122
    %s124 = scalar_lea.vmem [#allocation3], 4
    %v125 = vld [vmem:[%s124] sm:$0x3]
    %s126 = scalar_lea.vmem [#allocation5], 4
    %v127 = vld [vmem:[%s126] sm:$0x3]
    %s128 = ssub.s32 %s69, 256
    %v129 = vstv %s128
    %vm130 = vcmp.lt.s32.totalorder %v66, %v129
    %v131 = vsel %vm130, %v125, -1e+09
    %v132 = vsel %vm130, %v127, 0.0
    %v133 = vand.u32 2147483647, %v131
    %v134 = vsub.f32 0.0, %v133
    %v135 = vmul.f32 %v134, 1.442695
    %v136 = vpow.pop %v135
    %v137 = vadd.f32 %v136, 1.0
    %v138 = vrcp.pop %v137
    %vm139 = vcmp.ge.f32.partialorder %v131, 0.0
    %v140 = vmul.f32 %v136, %v138
    %v141 = vsel %vm139, %v138, %v140
    %v142 = vmul.f32 %v141, %v132
    %v143 = vadd.f32 %v114, %v142
    %v144 = vadd.f32 %v115, %v141
    %v145 = vadd.f32 %v116, %v132
    %v146 = vmax.f32 %v131, 0.0
    %v147 = vmul.f32 %v131, %v132
    %v148 = vsub.f32 %v146, %v147
    %v149 = vlog2.pop %v137
    %v150 = vmul.f32 %v149, 0.6931472
    %v151 = vadd.f32 %v148, %v150
    %v152 = vadd.f32 %v123, %v151
    %s153 = scalar_lea.vmem [#allocation3], 6
    %v154 = vld [vmem:[%s153] sm:$0x3]
    %s155 = scalar_lea.vmem [#allocation5], 6
    %v156 = vld [vmem:[%s155] sm:$0x3]
    %s157 = ssub.s32 %s69, 384
    %v158 = vstv %s157
    %vm159 = vcmp.lt.s32.totalorder %v66, %v158
    %v160 = vsel %vm159, %v154, -1e+09
    %v161 = vsel %vm159, %v156, 0.0
    %v162 = vand.u32 2147483647, %v160
    %v163 = vsub.f32 0.0, %v162
    %v164 = vmul.f32 %v163, 1.442695
    %v165 = vpow.pop %v164
    %v166 = vadd.f32 %v165, 1.0
    %v167 = vrcp.pop %v166
    %vm168 = vcmp.ge.f32.partialorder %v160, 0.0
    %v169 = vmul.f32 %v165, %v167
    %v170 = vsel %vm168, %v167, %v169
    %v171 = vmul.f32 %v170, %v161
    %v172 = vadd.f32 %v143, %v171
    %v173 = vadd.f32 %v144, %v170
    %v174 = vadd.f32 %v145, %v161
    %v175 = vmax.f32 %v160, 0.0
    %v176 = vmul.f32 %v160, %v161
    %v177 = vsub.f32 %v175, %v176
    %v178 = vlog2.pop %v166
    %v179 = vmul.f32 %v178, 0.6931472
    %v180 = vadd.f32 %v177, %v179
    %v181 = vadd.f32 %v152, %v180
    %s182 = scalar_lea.vmem [#allocation3], 8
    %v183 = vld [vmem:[%s182] sm:$0x3]
    %s184 = scalar_lea.vmem [#allocation5], 8
    %v185 = vld [vmem:[%s184] sm:$0x3]
    %s186 = ssub.s32 %s69, 512
    %v187 = vstv %s186
    %vm188 = vcmp.lt.s32.totalorder %v66, %v187
    %v189 = vsel %vm188, %v183, -1e+09
    %v190 = vsel %vm188, %v185, 0.0
    %v191 = vand.u32 2147483647, %v189
    %v192 = vsub.f32 0.0, %v191
    %v193 = vmul.f32 %v192, 1.442695
    %v194 = vpow.pop %v193
    %v195 = vadd.f32 %v194, 1.0
    %v196 = vrcp.pop %v195
    %vm197 = vcmp.ge.f32.partialorder %v189, 0.0
    %v198 = vmul.f32 %v194, %v196
    %v199 = vsel %vm197, %v196, %v198
    %v200 = vmul.f32 %v199, %v190
    %v201 = vadd.f32 %v172, %v200
    %v202 = vadd.f32 %v173, %v199
    %v203 = vadd.f32 %v174, %v190
    %v204 = vmax.f32 %v189, 0.0
    %v205 = vmul.f32 %v189, %v190
    %v206 = vsub.f32 %v204, %v205
    %v207 = vlog2.pop %v195
    %v208 = vmul.f32 %v207, 0.6931472
    %v209 = vadd.f32 %v206, %v208
    %v210 = vadd.f32 %v181, %v209
    %s211 = scalar_lea.vmem [#allocation3], 10
    %v212 = vld [vmem:[%s211] sm:$0x3]
    %s213 = scalar_lea.vmem [#allocation5], 10
    %v214 = vld [vmem:[%s213] sm:$0x3]
    %s215 = ssub.s32 %s69, 640
    %v216 = vstv %s215
    %vm217 = vcmp.lt.s32.totalorder %v66, %v216
    %v218 = vsel %vm217, %v212, -1e+09
    %v219 = vsel %vm217, %v214, 0.0
    %v220 = vand.u32 2147483647, %v218
    %v221 = vsub.f32 0.0, %v220
    %v222 = vmul.f32 %v221, 1.442695
    %v223 = vpow.pop %v222
    %v224 = vadd.f32 %v223, 1.0
    %v225 = vrcp.pop %v224
    %vm226 = vcmp.ge.f32.partialorder %v218, 0.0
    %v227 = vmul.f32 %v223, %v225
    %v228 = vsel %vm226, %v225, %v227
    %v229 = vmul.f32 %v228, %v219
    %v230 = vadd.f32 %v201, %v229
    %v231 = vadd.f32 %v202, %v228
    %v232 = vadd.f32 %v203, %v219
    %v233 = vmax.f32 %v218, 0.0
    %v234 = vmul.f32 %v218, %v219
    %v235 = vsub.f32 %v233, %v234
    %v236 = vlog2.pop %v224
    %v237 = vmul.f32 %v236, 0.6931472
    %v238 = vadd.f32 %v235, %v237
    %v239 = vadd.f32 %v210, %v238
    %s240 = scalar_lea.vmem [#allocation3], 12
    %v241 = vld [vmem:[%s240] sm:$0x3]
    %s242 = scalar_lea.vmem [#allocation5], 12
    %v243 = vld [vmem:[%s242] sm:$0x3]
    %s244 = ssub.s32 %s69, 768
    %v245 = vstv %s244
    %vm246 = vcmp.lt.s32.totalorder %v66, %v245
    %v247 = vsel %vm246, %v241, -1e+09
    %v248 = vsel %vm246, %v243, 0.0
    %v249 = vand.u32 2147483647, %v247
    %v250 = vsub.f32 0.0, %v249
    %v251 = vmul.f32 %v250, 1.442695
    %v252 = vpow.pop %v251
    %v253 = vadd.f32 %v252, 1.0
    %v254 = vrcp.pop %v253
    %vm255 = vcmp.ge.f32.partialorder %v247, 0.0
    %v256 = vmul.f32 %v252, %v254
    %v257 = vsel %vm255, %v254, %v256
    %v258 = vmul.f32 %v257, %v248
    %v259 = vadd.f32 %v230, %v258
    %v260 = vadd.f32 %v231, %v257
    %v261 = vadd.f32 %v232, %v248
    %v262 = vmax.f32 %v247, 0.0
    %v263 = vmul.f32 %v247, %v248
    %v264 = vsub.f32 %v262, %v263
    %v265 = vlog2.pop %v253
    %v266 = vmul.f32 %v265, 0.6931472
    %v267 = vadd.f32 %v264, %v266
    %v268 = vadd.f32 %v239, %v267
    %s269 = scalar_lea.vmem [#allocation3], 14
    %v270 = vld [vmem:[%s269] sm:$0x3]
    %s271 = scalar_lea.vmem [#allocation5], 14
    %v272 = vld [vmem:[%s271] sm:$0x3]
    %s273 = ssub.s32 %s69, 896
    %v274 = vstv %s273
    %vm275 = vcmp.lt.s32.totalorder %v66, %v274
    %v276 = vsel %vm275, %v270, -1e+09
    %v277 = vsel %vm275, %v272, 0.0
    %v278 = vand.u32 2147483647, %v276
    %v279 = vsub.f32 0.0, %v278
    %v280 = vmul.f32 %v279, 1.442695
    %v281 = vpow.pop %v280
    %v282 = vadd.f32 %v281, 1.0
    %v283 = vrcp.pop %v282
    %vm284 = vcmp.ge.f32.partialorder %v276, 0.0
    %v285 = vmul.f32 %v281, %v283
    %v286 = vsel %vm284, %v283, %v285
    %v287 = vmul.f32 %v286, %v277
    %v288 = vadd.f32 %v259, %v287
    %v289 = vadd.f32 %v260, %v286
    %v290 = vadd.f32 %v261, %v277
    %v291 = vmax.f32 %v276, 0.0
    %v292 = vmul.f32 %v276, %v277
    %v293 = vsub.f32 %v291, %v292
    %v294 = vlog2.pop %v282
    %v295 = vmul.f32 %v294, 0.6931472
    %v296 = vadd.f32 %v293, %v295
    %v297 = vadd.f32 %v268, %v296
    %v298 = vld [vmem:[#allocation2] sm:$0x3]
    %v299 = vadd.f32 %v298, %v297
    %300 = vst [vmem:[#allocation2] sm:$0x3] %v299
    %s301 = scalar_lea.vmem [#allocation2], 2
    %v302 = vld [vmem:[%s301] sm:$0x3]
    %v303 = vadd.f32 %v302, %v288
    %304 = vst [vmem:[%s301] sm:$0x3] %v303
    %s305 = scalar_lea.vmem [#allocation2], 4
    %v306 = vld [vmem:[%s305] sm:$0x3]
    %v307 = vadd.f32 %v306, %v289
    %308 = vst [vmem:[%s305] sm:$0x3] %v307
    %s309 = scalar_lea.vmem [#allocation2], 6
    %v310 = vld [vmem:[%s309] sm:$0x3]
    %v311 = vadd.f32 %v310, %v290
    %312 = vst [vmem:[%s309] sm:$0x3] %v311
    // Predicated region
    $region22: #{tpu_custom_call.1} parent=1 // pred_check
      %p313 = pneg %p55
    $region23: #{tpu_custom_call.1} parent=1 // pred_check_branch
      %315 = sbr.rel (%p313) target = $region25
    $region24: #{tpu_custom_call.1} parent=1 // pred_region
      %v316 = vld [vmem:[#allocation2] sm:$0x3]
      %v317 = vld [vmem:[#allocation2 + $0x2] sm:$0x3]
      %v318 = vld [vmem:[#allocation2 + $0x4] sm:$0x3]
      %v319 = vld [vmem:[#allocation2 + $0x6] sm:$0x3]
      %vm320 = vcmask 1041408
      %v321 = vsel %vm320, %v316, 0.0
      %322 = vadd.xlane.f32.xlu0 %v321
      %v323 = vpop.xlane.xlu0 %322
      %v324 = vsel %vm320, %v317, 0.0
      %325 = vadd.xlane.f32.xlu0 %v324
      %v326 = vpop.xlane.xlu0 %325
      %v327 = vsel %vm320, %v318, 0.0
      %328 = vadd.xlane.f32.xlu0 %v327
      %v329 = vpop.xlane.xlu0 %328
      %v330 = vsel %vm320, %v319, 0.0
      %331 = vadd.xlane.f32.xlu0 %v330
      %v332 = vpop.xlane.xlu0 %331
      %v337 = vlaneseq
      %v338 = vshrl.u32 %v337, 7
      %v339 = vsub.s32 %v66, %v338
      %v340 = vrot.slane %v323, %v339
      %v341 = vlaneseq
      %v342 = vshrl.u32 %v341, 7
      %v343 = vsub.s32 %v66, %v342
      %v344 = vrot.slane %v326, %v343
      %v345 = vlaneseq
      %v346 = vshrl.u32 %v345, 7
      %v347 = vsub.s32 %v66, %v346
      %v348 = vrot.slane %v329, %v347
      %v349 = vlaneseq
      %v350 = vshrl.u32 %v349, 7
      %v351 = vsub.s32 %v66, %v350
      %v352 = vrot.slane %v332, %v351
      %vm353 = vcmask 1041409
      %v354 = vsel %vm353, %v344, %v340
      %vm355 = vcmask 1042434
      %v356 = vsel %vm355, %v348, %v354
      %vm357 = vcmask 1043459
      %v358 = vsel %vm357, %v352, %v356
      %vm360 = vcmask 11264
      %361 = vst.msk [vmem:[%s2] sm:$0xf] %vm360, %v358
    $region25: #{tpu_custom_call.1} parent=1 // pred_fallthru
      _
    // Predicated region
    $region26: #{tpu_custom_call.1} parent=1 // pred_check
      _
    $region27: #{tpu_custom_call.1} parent=1 // pred_check_branch
      %363 = sbr.rel (0) target = $region29
    $region28: #{tpu_custom_call.1} parent=1 // pred_region
      _
    $region29: #{tpu_custom_call.1} parent=1 // pred_fallthru
      _
    // Predicated region
    $region30: #{tpu_custom_call.1} parent=1 // pred_check
      _
    $region31: #{tpu_custom_call.1} parent=1 // pred_check_branch
      %365 = sbr.rel (0) target = $region33
    $region32: #{tpu_custom_call.1} parent=1 // pred_region
      _
    $region33: #{tpu_custom_call.1} parent=1 // pred_fallthru
      _
    %366 = vsyncpa [#allocation4], 1
    %367 = vsyncpa [#allocation6], 1

</llo_original>
